<compile_context>
chip_gen: v5e
topology: v5e:2x2
jax: 0.10.0
libtpu: 0.0.40
codegen_flags: <defaults>
</compile_context>

<pallas_src>
import functools

import jax
import jax.numpy as jnp
from jax.experimental import pallas as pl
from jax.experimental.pallas import tpu as pltpu


# -----------------------------------------------------------------------------
# Pallas kernel: one (batch, row-tile) output block per grid step.
# -----------------------------------------------------------------------------
def _cnbr_kernel(x_ref, w_ref, a_ref, o_ref, *, Mt, W, kH, row_align):
    """out = PReLU(conv(x)) for one row-tile, dense im2col-in-K matmuls.

    x_ref: (1, Hp*W, kW*Cin)  bf16  y-padded, x-im2col'd image (whole image)
    w_ref: (kH, kW*Cin, Cout) bf16  per-dy dense weight (groups block-diag)
    a_ref: (1, Cout)          f32   PReLU alpha
    o_ref: (Mt, Cout)         f32   one row-tile (Ty*W output rows)
    """
    iy = pl.program_id(1)
    acc = None
    for dy in range(kH):                       # short static loop -> unrolled
        # rows [ (iy*Ty + dy)*W , +Mt ) of the padded, flattened image;
        # starts are multiples of W (>= 8 here) -> sublane aligned.
        start = pl.multiple_of(iy * Mt + dy * W, row_align)
        part = jnp.dot(x_ref[0, pl.ds(start, Mt), :], w_ref[dy],
                       preferred_element_type=jnp.float32)
        acc = part if acc is None else acc + part
    a = a_ref[...]                             # (1, Cout), broadcasts over rows
    o_ref[...] = jnp.where(acc >= 0.0, acc, a * acc)


# -----------------------------------------------------------------------------
# One-time (parameter-load-time) preprocessing: hoisted out of the forward.
# -----------------------------------------------------------------------------
def prepare_params(w_oihw, alpha, *, groups=1):
    """OIHW conv weight -> (kH, kW*Cin, Cout) bf16 im2col-in-K weight."""
    Cout, cpg_in, kH, kW = w_oihw.shape
    Cin = cpg_in * groups
    cpg_out = Cout // groups
    wt = jnp.transpose(w_oihw.astype(jnp.float32), (2, 3, 1, 0))  # (kH,kW,cpg_in,Cout)
    wt = wt.reshape(kH, kW, cpg_in, groups, cpg_out)
    eye = jnp.eye(groups, dtype=jnp.float32)
    # dense[h, w, g*cpg_in + ci, G*cpg_out + co] = wt[h, w, ci, G, co] * (g == G)
    dense = jnp.einsum('hwcGo,gG->hwgcGo', wt, eye).reshape(kH, kW, Cin, Cout)
    w_k = dense.reshape(kH, kW * Cin, Cout).astype(jnp.bfloat16)
    alpha_row = alpha.astype(jnp.float32).reshape(1, Cout)
    return w_k, alpha_row


# -----------------------------------------------------------------------------
# Forward wrapper: layout plumbing + pallas_call.
# -----------------------------------------------------------------------------
@functools.partial(jax.jit, static_argnames=("stride",))
def cnbr_forward_pallas(x_nchw, w_k, alpha_row, *, stride=1):
    # TODO(synk): stride > 1 down-sampling would need a strided output-row
    #             index_map; only the module default stride=1 is implemented.
    assert stride == 1, "only stride=1 is implemented"
    B, Cin, H, W = x_nchw.shape
    kH, K, Cout = w_k.shape
    kW = K // Cin
    assert kW * Cin == K
    pH, pW = (kH - 1) // 2, (kW - 1) // 2      # y from kH, x from kW
    Hp = H + 2 * pH

    # ---- activation layout: NCHW -> (B, Hp*W, kW*Cin), bf16 -----------------
    # TODO(synk): in a multi-layer pipeline, keep activations in this folded
    #             layout across layers instead of round-tripping through NCHW.
    x = jnp.transpose(x_nchw, (0, 2, 3, 1)).astype(jnp.bfloat16)   # NHWC
    x = jnp.pad(x, ((0, 0), (pH, pH), (pW, pW), (0, 0)))           # (B,Hp,Wp,Cin)
    x = jnp.stack([x[:, :, dx:dx + W, :] for dx in range(kW)], axis=3)
    x_fold = x.reshape(B, Hp * W, K)                               # (B,Hp*W,kW*Cin)

    # ---- row tiling: M per matmul = Ty*W (>= 128 when possible) -------------
    Ty = H
    for t in range(1, H + 1):
        if H % t == 0 and (t * W) % 8 == 0 and t * W >= 128:
            Ty = t
            break
    Mt = Ty * W
    n_yt = H // Ty

    kern = functools.partial(_cnbr_kernel, Mt=Mt, W=W, kH=kH, row_align=W)
    out_flat = pl.pallas_call(
        kern,
        out_shape=jax.ShapeDtypeStruct((B * H * W, Cout), jnp.float32),
        grid=(B, n_yt),
        in_specs=[
            # whole (padded, im2col'd) image; constant across the y-tile axis
            pl.BlockSpec((1, Hp * W, K), lambda b, t: (b, 0, 0)),
            # true-size weight: resident across the whole grid
            pl.BlockSpec((kH, K, Cout), lambda b, t: (0, 0, 0)),
            pl.BlockSpec((1, Cout), lambda b, t: (0, 0)),
        ],
        out_specs=pl.BlockSpec((Mt, Cout), lambda b, t: (b * n_yt + t, 0)),
        compiler_params=pltpu.CompilerParams(
            dimension_semantics=("parallel", "parallel")),
    )(x_fold, w_k, alpha_row)

    out = out_flat.reshape(B, H, W, Cout)
    return jnp.transpose(out, (0, 3, 1, 2))


# -----------------------------------------------------------------------------
# Pure-JAX reference (same semantics as the PyTorch module).
# -----------------------------------------------------------------------------
def cnbr_forward_ref(x_nchw, w_oihw, alpha, *, stride=1, groups=1):
    kH, kW = int(w_oihw.shape[2]), int(w_oihw.shape[3])
    pH, pW = (kH - 1) // 2, (kW - 1) // 2
    y = jax.lax.conv_general_dilated(
        x_nchw, w_oihw,
        window_strides=(stride, stride),
        padding=((pH, pH), (pW, pW)),
        dimension_numbers=("NCHW", "OIHW", "NCHW"),
        feature_group_count=groups,
        precision=jax.lax.Precision.HIGHEST)
    a = alpha.reshape(1, -1, 1, 1)
    return jnp.where(y >= 0, y, a * y)


# -----------------------------------------------------------------------------
if __name__ == "__main__":
    key = jax.random.PRNGKey(0)
    B, H, W = 2, 16, 16

    configs = [
        dict(nIn=16, nOut=32, kSize=3, groups=1),   # CnBR(16, 32, 3)
        dict(nIn=16, nOut=16, kSize=5, groups=4),   # CnBR(16, 16, 5, groups=4)
    ]

    for cfg in configs:
        nIn, nOut = cfg["nIn"], cfg["nOut"]
        kSize, groups = cfg["kSize"], cfg["groups"]
        key, kx, kw, ka = jax.random.split(key, 4)

        x = jax.random.normal(kx, (B, nIn, H, W), jnp.float32)
        w = 0.3 * jax.random.normal(
            kw, (nOut, nIn // groups, kSize, kSize), jnp.float32)
        # nn.PReLU(nOut) initializes alpha to 0.25; perturb per channel so any
        # channel-mapping bug in the folded layout is caught.
        alpha = 0.25 + 0.05 * jax.random.normal(ka, (nOut,), jnp.float32)

        # one-time parameter preprocessing (hoisted out of the forward graph)
        w_k, a_row = prepare_params(w, alpha, groups=groups)
        w_k, a_row = jax.block_until_ready((w_k, a_row))

        out = cnbr_forward_pallas(x, w_k, a_row, stride=1)
        out = jax.block_until_ready(out)

        # Primary correctness check: the kernel feeds the MXU bf16 operands
        # with f32 accumulation, so compare against a reference given the same
        # bf16-rounded operands (should agree to f32-accumulation noise).
        x_b = x.astype(jnp.bfloat16).astype(jnp.float32)
        w_b = w.astype(jnp.bfloat16).astype(jnp.float32)
        ref_b = cnbr_forward_ref(x_b, w_b, alpha, stride=1, groups=groups)
        err = float(jnp.max(jnp.abs(out - ref_b)))
        assert err < 1e-2, f"{cfg}: mismatch vs bf16-matched reference, err={err}"

        # Sanity vs the full-f32 reference (difference = bf16 input rounding).
        ref = cnbr_forward_ref(x, w, alpha, stride=1, groups=groups)
        err_f32 = float(jnp.max(jnp.abs(out - ref)))
        assert err_f32 < 0.3, f"{cfg}: too far from f32 reference, err={err_f32}"

    print("KERNEL_OK")
</pallas_src>

<mosaic_0001>
module attributes {stable_mosaic.version = 11 : i64} {
  func.func @_cnbr_kernel(%arg0: i32, %arg1: i32, %arg2: memref<1x288x48xbf16, #tpu.memory_space<vmem>>, %arg3: memref<3x48x32xbf16, #tpu.memory_space<vmem>>, %arg4: memref<1x32xf32, #tpu.memory_space<vmem>>, %arg5: memref<128x32xf32, #tpu.memory_space<vmem>>) attributes {dimension_semantics = [#tpu.dimension_semantics<parallel>, #tpu.dimension_semantics<parallel>], iteration_bounds = array<i64: 2, 2>, scalar_prefetch = 0 : i64, scratch_operands = 0 : i64, tpu.core_type = #tpu.core_type<tc>, window_params = [{transform_indices = @transform_0, window_bounds = array<i64: 1, 288, 48>}, {pipeline_mode = #tpu.pipeline_mode<synchronous>, transform_indices = @transform_1, window_bounds = array<i64: 3, 48, 32>}, {pipeline_mode = #tpu.pipeline_mode<synchronous>, transform_indices = @transform_2, window_bounds = array<i64: 1, 32>}, {transform_indices = @transform_3, window_bounds = array<i64: 128, 32>}]} {
    %c128_i32 = arith.constant 128 : i32
    %0 = arith.muli %arg1, %c128_i32 : i32
    %c0_i32 = arith.constant 0 : i32
    %1 = arith.addi %0, %c0_i32 : i32
    %2 = tpu.assume_multiple %1, 16 : i32
    %c0 = arith.constant 0 : index
    %3 = arith.index_cast %2 : i32 to index
    %c0_0 = arith.constant 0 : index
    %4 = vector.load %arg2[%c0, %3, %c0_0] : memref<1x288x48xbf16, #tpu.memory_space<vmem>>, vector<1x128x48xbf16>
    %5 = vector.shape_cast %4 : vector<1x128x48xbf16> to vector<128x48xbf16>
    %c0_1 = arith.constant 0 : index
    %c0_2 = arith.constant 0 : index
    %c0_3 = arith.constant 0 : index
    %6 = vector.load %arg3[%c0_1, %c0_2, %c0_3] : memref<3x48x32xbf16, #tpu.memory_space<vmem>>, vector<1x48x32xbf16>
    %7 = vector.shape_cast %6 : vector<1x48x32xbf16> to vector<48x32xbf16>
    %cst = arith.constant dense<0.000000e+00> : vector<128x32xf32>
    %8 = tpu.matmul %5, %7, %cst {dimension_numbers = #tpu.dot_dimension_numbers<[1], [0], [0], [1], [0, 0, 1, 1], [], []>} : vector<128x48xbf16>, vector<48x32xbf16>, vector<128x32xf32> -> vector<128x32xf32>
    %c128_i32_4 = arith.constant 128 : i32
    %9 = arith.muli %arg1, %c128_i32_4 : i32
    %c16_i32 = arith.constant 16 : i32
    %10 = arith.addi %9, %c16_i32 : i32
    %11 = tpu.assume_multiple %10, 16 : i32
    %c0_5 = arith.constant 0 : index
    %12 = arith.index_cast %11 : i32 to index
    %c0_6 = arith.constant 0 : index
    %13 = vector.load %arg2[%c0_5, %12, %c0_6] : memref<1x288x48xbf16, #tpu.memory_space<vmem>>, vector<1x128x48xbf16>
    %14 = vector.shape_cast %13 : vector<1x128x48xbf16> to vector<128x48xbf16>
    %c1 = arith.constant 1 : index
    %c0_7 = arith.constant 0 : index
    %c0_8 = arith.constant 0 : index
    %15 = vector.load %arg3[%c1, %c0_7, %c0_8] : memref<3x48x32xbf16, #tpu.memory_space<vmem>>, vector<1x48x32xbf16>
    %16 = vector.shape_cast %15 : vector<1x48x32xbf16> to vector<48x32xbf16>
    %cst_9 = arith.constant dense<0.000000e+00> : vector<128x32xf32>
    %17 = tpu.matmul %14, %16, %cst_9 {dimension_numbers = #tpu.dot_dimension_numbers<[1], [0], [0], [1], [0, 0, 1, 1], [], []>} : vector<128x48xbf16>, vector<48x32xbf16>, vector<128x32xf32> -> vector<128x32xf32>
    %18 = arith.addf %8, %17 : vector<128x32xf32>
    %c128_i32_10 = arith.constant 128 : i32
    %19 = arith.muli %arg1, %c128_i32_10 : i32
    %c32_i32 = arith.constant 32 : i32
    %20 = arith.addi %19, %c32_i32 : i32
    %21 = tpu.assume_multiple %20, 16 : i32
    %c0_11 = arith.constant 0 : index
    %22 = arith.index_cast %21 : i32 to index
    %c0_12 = arith.constant 0 : index
    %23 = vector.load %arg2[%c0_11, %22, %c0_12] : memref<1x288x48xbf16, #tpu.memory_space<vmem>>, vector<1x128x48xbf16>
    %24 = vector.shape_cast %23 : vector<1x128x48xbf16> to vector<128x48xbf16>
    %c2 = arith.constant 2 : index
    %c0_13 = arith.constant 0 : index
    %c0_14 = arith.constant 0 : index
    %25 = vector.load %arg3[%c2, %c0_13, %c0_14] : memref<3x48x32xbf16, #tpu.memory_space<vmem>>, vector<1x48x32xbf16>
    %26 = vector.shape_cast %25 : vector<1x48x32xbf16> to vector<48x32xbf16>
    %cst_15 = arith.constant dense<0.000000e+00> : vector<128x32xf32>
    %27 = tpu.matmul %24, %26, %cst_15 {dimension_numbers = #tpu.dot_dimension_numbers<[1], [0], [0], [1], [0, 0, 1, 1], [], []>} : vector<128x48xbf16>, vector<48x32xbf16>, vector<128x32xf32> -> vector<128x32xf32>
    %28 = arith.addf %18, %27 : vector<128x32xf32>
    %c0_16 = arith.constant 0 : index
    %c0_17 = arith.constant 0 : index
    %29 = vector.load %arg4[%c0_16, %c0_17] : memref<1x32xf32, #tpu.memory_space<vmem>>, vector<1x32xf32>
    %cst_18 = arith.constant 0.000000e+00 : f32
    %30 = vector.broadcast %cst_18 : f32 to vector<128x32xf32>
    %31 = arith.cmpf oge, %28, %30 : vector<128x32xf32>
    %32 = vector.broadcast %29 : vector<1x32xf32> to vector<128x32xf32>
    %33 = arith.mulf %32, %28 : vector<128x32xf32>
    %34 = arith.select %31, %28, %33 : vector<128x32xi1>, vector<128x32xf32>
    %c0_19 = arith.constant 0 : index
    %c0_20 = arith.constant 0 : index
    %35 = vector.load %arg5[%c0_19, %c0_20] : memref<128x32xf32, #tpu.memory_space<vmem>>, vector<128x32xf32>
    tpu.vector_store %arg5[%c0_19, %c0_20], %34 {strides = array<i32>} : memref<128x32xf32, #tpu.memory_space<vmem>>, vector<128x32xf32>,
    return
  }
  func.func @transform_0(%arg0: i32, %arg1: i32) -> (i32, i32, i32) {
    %c0_i32 = arith.constant 0 : i32
    %c0_i32_0 = arith.constant 0 : i32
    %c0_i32_1 = arith.constant 0 : i32
    return %arg0, %c0_i32, %c0_i32_0 : i32, i32, i32
  }
  func.func @transform_1(%arg0: i32, %arg1: i32) -> (i32, i32, i32) {
    %c0_i32 = arith.constant 0 : i32
    %c0_i32_0 = arith.constant 0 : i32
    %c0_i32_1 = arith.constant 0 : i32
    %c0_i32_2 = arith.constant 0 : i32
    return %c0_i32, %c0_i32_0, %c0_i32_1 : i32, i32, i32
  }
  func.func @transform_2(%arg0: i32, %arg1: i32) -> (i32, i32) {
    %c0_i32 = arith.constant 0 : i32
    %c0_i32_0 = arith.constant 0 : i32
    %c0_i32_1 = arith.constant 0 : i32
    return %c0_i32, %c0_i32_0 : i32, i32
  }
  func.func @transform_3(%arg0: i32, %arg1: i32) -> (i32, i32) {
    %c2_i32 = arith.constant 2 : i32
    %0 = arith.muli %arg0, %c2_i32 : i32
    %1 = arith.addi %0, %arg1 : i32
    %c0_i32 = arith.constant 0 : i32
    %c0_i32_0 = arith.constant 0 : i32
    return %1, %c0_i32 : i32, i32
  }
}

</mosaic_0001>

<llo_original>
// kernel: cnbr_forward_pallas.1
$region0: #{cnbr_forward_pallas.1}
  #allocation0 [shape = 'u32[]', space=smem, size = 0x4, offset = 0x4, fixed_abs, tag = 'smem constant byte address 0x4 - core index']
  #allocation1 [shape = 'u32[72,128]{1,0:T(1,128)}', space=vmem, size = 0x9000, scoped, tag = 'internal scratch']
  %s0 = inlined_call_operand.vmem [shape: bf16[2,288,48], index: 0, kind: input, shape index: {}]
  %s1 = inlined_call_operand.vmem [shape: bf16[3,48,32], index: 1, kind: input, shape index: {}]
  %s2 = inlined_call_operand.vmem [shape: f32[1,32], index: 2, kind: input, shape index: {}]
  %s3 = inlined_call_operand.hbm [shape: f32[512,32], index: 3, kind: output, shape index: {}]
  %s4 = sld [smem:[#allocation0]]
  $region45: #{cnbr_forward_pallas.1} parent=0
    _
  %s6 = ssub.s32 1, %s4
  %s7 = scalar_select 0, %s6, %s4
  $region1: #{cnbr_forward_pallas.1} parent=0
    #allocation2 [shape = 'u8[131072]{0}', space=vmem, size = 0x20000, scoped, tag = 'output window, operand 0']
    #allocation3 [shape = 's32[2]{0}', space=sflag, size = 0x8, scoped, tag = 'scoped memory for cnbr_forward_pallas.1']
    %8 = vsyncpa [#allocation3], 0
    %s9 = scalar_lea.sflag [#allocation3], 1
    %10 = vsyncpa %s9, 0
    loop: start=0, step=1, limit=6
    $region2: #{cnbr_forward_pallas.1} parent=1 // loop_pre_header
      _
    $region3: #{cnbr_forward_pallas.1} parent=1 // loop_header
      %s12 = sphi 0, %s16
      %p13 = scmp.ge.s32.totalorder %s12, 6
      %s19 = sphi 0, %s31
      %s20 = sphi 0, %s27
      %s21 = sphi 0, %s19
      %s22 = sphi 0, %s20
      %s23 = sphi 0, %s21
      %s24 = sphi 0, %s22
      %s34 = sphi 0, %s36
      %s37 = sphi 0, %s34
      %s38 = sphi 0, %s37
      %s54 = sphi 0, %s38
      %s58 = sphi 0, %s58
      %s60 = sphi 0, %s58
      %s61 = sphi 0, %s60
      %s75 = sphi 0, %s61
      %s79 = sphi 0, %s79
      %s81 = sphi 0, %s79
      %s82 = sphi 0, %s81
      %s96 = sphi 0, %s82
      %s106 = sphi 0, %s108
      %s109 = sphi 0, %s106
      %s110 = sphi 0, %s109
      %s126 = sphi 0, %s110
    $region4: #{cnbr_forward_pallas.1} parent=1 // loop_header_branch
      %15 = sbr.rel (%p13) target = $region8
    $region5: #{cnbr_forward_pallas.1} parent=1 // loop_body
      %s17 = ssub.s32 %s12, 1
      %s18 = ssub.s32 %s12, 2
      %s25 = sadd.s32 1, %s20
      %p26 = scmp.ge.s32.totalorder %s25, 2
      %s27 = scalar_select %p26, 0, %s25
      %s28 = sadd.s32 1, %s19
      %s29 = scalar_select %p26, %s28, %s19
      %p30 = scmp.ge.s32.totalorder %s29, 2
      %s31 = scalar_select %p30, 0, %s29
      %s32 = ssub.s32 %s19, %s31
      %p33 = scmp.eq.s32.totalorder %s32, 0
      %s35 = sadd.s32 %s34, 1
      %s36 = scalar_select %p33, %s34, %s35
      %p39 = pneg %p33
      %p40 = scmp.eq.s32.totalorder %s12, 3
      %p41 = por %p39, %p40
      %p42 = scmp.ne.s32.totalorder %s34, %s37
      %p43 = scmp.eq.s32.totalorder %s12, 0
      %p44 = por %p42, %p43
      %p45 = scmp.ne.s32.totalorder %s34, %s37
      %p46 = scmp.eq.s32.totalorder %s17, 3
      %p47 = por %p45, %p46
      %p48 = scmp.ne.s32.totalorder %s37, %s38
      %p49 = scmp.eq.s32.totalorder %s17, 0
      %p50 = por %p48, %p49
      %p51 = scmp.ne.s32.totalorder %s37, %s38
      %p52 = scmp.eq.s32.totalorder %s18, 3
      %p53 = por %p51, %p52
      %p55 = scmp.ne.s32.totalorder %s38, %s54
      %p56 = scmp.eq.s32.totalorder %s18, 0
      %p57 = por %p55, %p56
      %s59 = sadd.s32 %s58, 1
      %p62 = scmp.eq.s32.totalorder %s12, 3
      %p63 = scmp.ne.s32.totalorder %s58, %s60
      %p64 = scmp.eq.s32.totalorder %s12, 0
      %p65 = por %p63, %p64
      %p66 = scmp.ne.s32.totalorder %s58, %s60
      %p67 = scmp.eq.s32.totalorder %s17, 3
      %p68 = por %p66, %p67
      %p69 = scmp.ne.s32.totalorder %s60, %s61
      %p70 = scmp.eq.s32.totalorder %s17, 0
      %p71 = por %p69, %p70
      %p72 = scmp.ne.s32.totalorder %s60, %s61
      %p73 = scmp.eq.s32.totalorder %s18, 3
      %p74 = por %p72, %p73
      %p76 = scmp.ne.s32.totalorder %s61, %s75
      %p77 = scmp.eq.s32.totalorder %s18, 0
      %p78 = por %p76, %p77
      %s80 = sadd.s32 %s79, 1
      %p83 = scmp.eq.s32.totalorder %s12, 3
      %p84 = scmp.ne.s32.totalorder %s79, %s81
      %p85 = scmp.eq.s32.totalorder %s12, 0
      %p86 = por %p84, %p85
      %p87 = scmp.ne.s32.totalorder %s79, %s81
      %p88 = scmp.eq.s32.totalorder %s17, 3
      %p89 = por %p87, %p88
      %p90 = scmp.ne.s32.totalorder %s81, %s82
      %p91 = scmp.eq.s32.totalorder %s17, 0
      %p92 = por %p90, %p91
      %p93 = scmp.ne.s32.totalorder %s81, %s82
      %p94 = scmp.eq.s32.totalorder %s18, 3
      %p95 = por %p93, %p94
      %p97 = scmp.ne.s32.totalorder %s82, %s96
      %p98 = scmp.eq.s32.totalorder %s18, 0
      %p99 = por %p97, %p98
      %s100 = smul.u32 %s19, 2
      %s101 = sadd.s32 %s100, %s20
      %s102 = smul.u32 %s31, 2
      %s103 = sadd.s32 %s102, %s27
      %s104 = ssub.s32 %s101, %s103
      %p105 = scmp.eq.s32.totalorder %s104, 0
      %s107 = sadd.s32 %s106, 1
      %s108 = scalar_select %p105, %s106, %s107
      %p111 = pneg %p105
      %p112 = scmp.eq.s32.totalorder %s12, 3
      %p113 = por %p111, %p112
      %p114 = scmp.ne.s32.totalorder %s106, %s109
      %p115 = scmp.eq.s32.totalorder %s12, 0
      %p116 = por %p114, %p115
      %p117 = scmp.ne.s32.totalorder %s106, %s109
      %p118 = scmp.eq.s32.totalorder %s17, 3
      %p119 = por %p117, %p118
      %p120 = scmp.ne.s32.totalorder %s109, %s110
      %p121 = scmp.eq.s32.totalorder %s17, 0
      %p122 = por %p120, %p121
      %p123 = scmp.ne.s32.totalorder %s109, %s110
      %p124 = scmp.eq.s32.totalorder %s18, 3
      %p125 = por %p123, %p124
      %p127 = scmp.ne.s32.totalorder %s110, %s126
      %p128 = scmp.eq.s32.totalorder %s18, 0
      %p129 = por %p127, %p128
      %p130 = scmp.le.s32.totalorder 1, %s12
      %p131 = scmp.lt.s32.totalorder %s12, 5
      %p132 = pnand %p130, %p131
      %p133 = pneg %p132
      // Predicated region
      $region9: #{cnbr_forward_pallas.1} parent=5 // pred_check
        _
      $region10: #{cnbr_forward_pallas.1} parent=5 // pred_check_branch
        %135 = sbr.rel (%p132) target = $region12
      $region11: #{cnbr_forward_pallas.1} parent=5 // pred_region
        %s136 = ssub.s32 %s12, 1
        // Predicated region
        $region13: #{cnbr_forward_pallas.1} parent=11 // pred_check
          %p137 = pneg %p71
        $region14: #{cnbr_forward_pallas.1} parent=11 // pred_check_branch
          %139 = sbr.rel (%p137) target = $region16
        $region15: #{cnbr_forward_pallas.1} parent=11 // pred_region
          _
        $region16: #{cnbr_forward_pallas.1} parent=11 // pred_fallthru
          _
        // Predicated region
        $region17: #{cnbr_forward_pallas.1} parent=11 // pred_check
          %p140 = pneg %p92
        $region18: #{cnbr_forward_pallas.1} parent=11 // pred_check_branch
          %142 = sbr.rel (%p140) target = $region20
        $region19: #{cnbr_forward_pallas.1} parent=11 // pred_region
          _
        $region20: #{cnbr_forward_pallas.1} parent=11 // pred_fallthru
          _
      $region12: #{cnbr_forward_pallas.1} parent=5 // pred_fallthru
        _
      %p143 = scmp.lt.s32.totalorder %s12, 4
      // Predicated region
      $region21: #{cnbr_forward_pallas.1} parent=5 // pred_check
        %p144 = pneg %p143
      $region22: #{cnbr_forward_pallas.1} parent=5 // pred_check_branch
        %146 = sbr.rel (%p144) target = $region24
      $region23: #{cnbr_forward_pallas.1} parent=5 // pred_region
        // Predicated region
        $region25: #{cnbr_forward_pallas.1} parent=23 // pred_check
          %p147 = pneg %p44
        $region26: #{cnbr_forward_pallas.1} parent=23 // pred_check_branch
          %149 = sbr.rel (%p147) target = $region28
        $region27: #{cnbr_forward_pallas.1} parent=23 // pred_region
          %p150 = scmp.lt.s32.totalorder %s19, 1
          %s151 = scalar_select %p150, %s19, 1
          %s152 = smul.addr %s151, 36
          %s153 = smul.addr %s152, 4
          %s154 = scalar_lea.vmem %s0, %s153
        $region28: #{cnbr_forward_pallas.1} parent=23 // pred_fallthru
          _
      $region24: #{cnbr_forward_pallas.1} parent=5 // pred_fallthru
        _
      %p155 = scmp.le.s32.totalorder 1, %s12
      %p156 = scmp.lt.s32.totalorder %s12, 5
      %p157 = pnand %p155, %p156
      %p158 = pneg %p157
      // Predicated region
      $region29: #{cnbr_forward_pallas.1} parent=5 // pred_check
        _
      $region30: #{cnbr_forward_pallas.1} parent=5 // pred_check_branch
        %160 = sbr.rel (%p157) target = $region32
      $region31: #{cnbr_forward_pallas.1} parent=5 // pred_region
        %s161 = ssub.s32 %s12, 1
        %p162 = scmp.lt.s32.totalorder %s21, 1
        %s163 = scalar_select %p162, %s21, 1
        %s164 = smul.addr %s163, 36
        %s165 = smul.addr %s164, 4
        %s166 = scalar_lea.vmem %s0, %s165
        %p167 = pneg %p50
        %p168 = pneg %p47
        %p169 = pneg %p71
        %p170 = pneg %p68
        %p171 = pneg %p92
        %p172 = pneg %p89
        %p173 = pneg %p122
        %p174 = pneg %p119
        %s175 = sand.u32 %s109, 1
        %s176 = scalar_lea.sflag [#allocation3], %s175
        %s177 = sand.u32 %s109, 1
        %s178 = smul.addr %s177, 128
        %s179 = scalar_lea.vmem [#allocation2], %s178
        %p180 = scmp.lt.s32.totalorder %s21, 1
        %s181 = scalar_select %p180, %s21, 1
        %s182 = smul.addr %s181, 36
        %s183 = smul.addr %s182, 4
        %s184 = scalar_lea.vmem %s0, %s183
        %s185 = smul.u32 %s21, 2
        %s186 = sadd.s32 %s185, %s22
        %s187 = smul.u32 16, %s186
        %s189 = smul.u32 %s22, 128
        %s190 = sshra.s32 %s189, 3
        %s191 = sand.u32 %s189, 7
        %s192 = smul.addr %s190, 4
        %s193 = scalar_lea.vmem %s184, %s192
        %v194 = vld [vmem:[%s193] sm:$0xf]
        %v195 = vld [vmem:[%s193 + $0x4] sm:$0xf]
        %v196 = vld [vmem:[%s193 + $0x8] sm:$0xf]
        %v197 = vld [vmem:[%s193 + $0xc] sm:$0xf]
        %v198 = vld [vmem:[%s193 + $0x10] sm:$0xf]
        %v199 = vld [vmem:[%s193 + $0x14] sm:$0xf]
        %v200 = vld [vmem:[%s193 + $0x18] sm:$0xf]
        %v201 = vld [vmem:[%s193 + $0x1c] sm:$0xf]
        %v202 = vld [vmem:[%s193 + $0x20] sm:$0xf]
        %v203 = vld [vmem:[%s193 + $0x24] sm:$0xf]
        %v204 = vld [vmem:[%s193 + $0x28] sm:$0xf]
        %v205 = vld [vmem:[%s193 + $0x2c] sm:$0xf]
        %v206 = vld [vmem:[%s193 + $0x30] sm:$0xf]
        %v207 = vld [vmem:[%s193 + $0x34] sm:$0xf]
        %v208 = vld [vmem:[%s193 + $0x38] sm:$0xf]
        %v209 = vld [vmem:[%s193 + $0x3c] sm:$0xf]
        %v210 = vld [vmem:[%s1] sm:$0xf]
        %v211 = vld [vmem:[%s1 + $0x4] sm:$0xf]
        %v212 = vld [vmem:[%s1 + $0x8] sm:$0xf]
        %v213 = vld [vmem:[%s1 + $0xc] sm:$0xf]
        %v214 = vld [vmem:[%s1 + $0x10] sm:$0xf]
        %v215 = vld [vmem:[%s1 + $0x14] sm:$0xf]
        %s216 = sadd.s32 %s189, 16
        %s217 = sshra.s32 %s216, 3
        %s218 = sand.u32 %s216, 7
        %s219 = smul.addr %s217, 4
        %s220 = scalar_lea.vmem %s184, %s219
        %v221 = vld [vmem:[%s220] sm:$0xf]
        %v222 = vld [vmem:[%s220 + $0x4] sm:$0xf]
        %v223 = vld [vmem:[%s220 + $0x8] sm:$0xf]
        %v224 = vld [vmem:[%s220 + $0xc] sm:$0xf]
        %v225 = vld [vmem:[%s220 + $0x10] sm:$0xf]
        %v226 = vld [vmem:[%s220 + $0x14] sm:$0xf]
        %v227 = vld [vmem:[%s220 + $0x18] sm:$0xf]
        %v228 = vld [vmem:[%s220 + $0x1c] sm:$0xf]
        %v229 = vld [vmem:[%s220 + $0x20] sm:$0xf]
        %v230 = vld [vmem:[%s220 + $0x24] sm:$0xf]
        %v231 = vld [vmem:[%s220 + $0x28] sm:$0xf]
        %v232 = vld [vmem:[%s220 + $0x2c] sm:$0xf]
        %v233 = vld [vmem:[%s220 + $0x30] sm:$0xf]
        %v234 = vld [vmem:[%s220 + $0x34] sm:$0xf]
        %v235 = vld [vmem:[%s220 + $0x38] sm:$0xf]
        %v236 = vld [vmem:[%s220 + $0x3c] sm:$0xf]
        %s237 = scalar_lea.vmem %s1, 24
        %v238 = vld [vmem:[%s237] sm:$0xf]
        %v239 = vld [vmem:[%s237 + $0x4] sm:$0xf]
        %v240 = vld [vmem:[%s237 + $0x8] sm:$0xf]
        %v241 = vld [vmem:[%s237 + $0xc] sm:$0xf]
        %v242 = vld [vmem:[%s237 + $0x10] sm:$0xf]
        %v243 = vld [vmem:[%s237 + $0x14] sm:$0xf]
        %v260 = vunpack.c.l.b16 %v221
        %v261 = vunpack.c.l.b16 %v222
        %v262 = vunpack.c.l.b16 %v223
        %v263 = vunpack.c.l.b16 %v224
        %v264 = vunpack.c.l.b16 %v225
        %v265 = vunpack.c.l.b16 %v226
        %v266 = vunpack.c.l.b16 %v227
        %v267 = vunpack.c.l.b16 %v228
        %v268 = vunpack.c.l.b16 %v229
        %v269 = vunpack.c.l.b16 %v230
        %v270 = vunpack.c.l.b16 %v231
        %v271 = vunpack.c.l.b16 %v232
        %v272 = vunpack.c.l.b16 %v233
        %v273 = vunpack.c.l.b16 %v234
        %v274 = vunpack.c.l.b16 %v235
        %v275 = vunpack.c.l.b16 %v236
        %v276 = vpack.c.b16 %v261, %v260
        %v277 = vpack.c.b16 %v263, %v262
        %v278 = vpack.c.b16 %v265, %v264
        %v279 = vpack.c.b16 %v267, %v266
        %v280 = vpack.c.b16 %v269, %v268
        %v281 = vpack.c.b16 %v271, %v270
        %v282 = vpack.c.b16 %v273, %v272
        %v283 = vpack.c.b16 %v275, %v274
        %v290 = vunpack.c.l.b16 %v238
        %v291 = vunpack.c.l.b16 %v239
        %v292 = vunpack.c.l.b16 %v240
        %v293 = vunpack.c.l.b16 %v241
        %v294 = vunpack.c.l.b16 %v242
        %v295 = vunpack.c.l.b16 %v243
        %v296 = vpack.c.b16 %v291, %v290
        %v297 = vpack.c.b16 %v293, %v292
        %v298 = vpack.c.b16 %v295, %v294
        %vm302 = vcmask 392192
        %v304 = vsel %vm302, %v276, 0
        %v307 = vsel %vm302, %v277, 0
        %v310 = vsel %vm302, %v278, 0
        %v313 = vsel %vm302, %v279, 0
        %v316 = vsel %vm302, %v280, 0
        %v319 = vsel %vm302, %v281, 0
        %v322 = vsel %vm302, %v282, 0
        %v325 = vsel %vm302, %v283, 0
        %327 = vmatpush.bf16.msra.mxu0 0
        %328 = vmatpush.bf16.msra.mxu0 0
        %329 = vmatpush.bf16.msra.mxu0 0
        %330 = vmatpush.bf16.msra.mxu0 0
        %331 = vmatpush.bf16.msra.mxu0 0
        %332 = vmatpush.bf16.msra.mxu0 %v298
        %333 = vmatpush.bf16.msra.mxu0 %v297
        %334 = vmatpush.bf16.msra.mxu0 %v296
        %335 = vmatmul.bf16.gmra.mxu0 %v304
        %v336 = vpop.f32.mrf.mxu0
        %v337 = vadd.f32 0.0, %v336
        %v338 = vpop.f32.mrf.mxu0
        %v339 = vadd.f32 0.0, %v338
        %340 = vmatmul.bf16.gmra.mxu0 %v307
        %v341 = vpop.f32.mrf.mxu0
        %v342 = vadd.f32 0.0, %v341
        %v343 = vpop.f32.mrf.mxu0
        %v344 = vadd.f32 0.0, %v343
        %345 = vmatmul.bf16.gmra.mxu0 %v310
        %v346 = vpop.f32.mrf.mxu0
        %v347 = vadd.f32 0.0, %v346
        %v348 = vpop.f32.mrf.mxu0
        %v349 = vadd.f32 0.0, %v348
        %350 = vmatmul.bf16.gmra.mxu0 %v313
        %v351 = vpop.f32.mrf.mxu0
        %v352 = vadd.f32 0.0, %v351
        %v353 = vpop.f32.mrf.mxu0
        %v354 = vadd.f32 0.0, %v353
        %355 = vmatmul.bf16.gmra.mxu0 %v316
        %v356 = vpop.f32.mrf.mxu0
        %v357 = vadd.f32 0.0, %v356
        %v358 = vpop.f32.mrf.mxu0
        %v359 = vadd.f32 0.0, %v358
        %360 = vmatmul.bf16.gmra.mxu0 %v319
        %v361 = vpop.f32.mrf.mxu0
        %v362 = vadd.f32 0.0, %v361
        %v363 = vpop.f32.mrf.mxu0
        %v364 = vadd.f32 0.0, %v363
        %365 = vmatmul.bf16.gmra.mxu0 %v322
        %v366 = vpop.f32.mrf.mxu0
        %v367 = vadd.f32 0.0, %v366
        %v368 = vpop.f32.mrf.mxu0
        %v369 = vadd.f32 0.0, %v368
        %370 = vmatmul.bf16.gmra.mxu0 %v325
        %v371 = vpop.f32.mrf.mxu0
        %v372 = vadd.f32 0.0, %v371
        %v373 = vpop.f32.mrf.mxu0
        %v374 = vadd.f32 0.0, %v373
        %375 = vdwg.mxu0
        %v392 = vunpack.c.l.b16 %v194
        %v393 = vunpack.c.l.b16 %v195
        %v394 = vunpack.c.l.b16 %v196
        %v395 = vunpack.c.l.b16 %v197
        %v396 = vunpack.c.l.b16 %v198
        %v397 = vunpack.c.l.b16 %v199
        %v398 = vunpack.c.l.b16 %v200
        %v399 = vunpack.c.l.b16 %v201
        %v400 = vunpack.c.l.b16 %v202
        %v401 = vunpack.c.l.b16 %v203
        %v402 = vunpack.c.l.b16 %v204
        %v403 = vunpack.c.l.b16 %v205
        %v404 = vunpack.c.l.b16 %v206
        %v405 = vunpack.c.l.b16 %v207
        %v406 = vunpack.c.l.b16 %v208
        %v407 = vunpack.c.l.b16 %v209
        %v408 = vpack.c.b16 %v393, %v392
        %v409 = vpack.c.b16 %v395, %v394
        %v410 = vpack.c.b16 %v397, %v396
        %v411 = vpack.c.b16 %v399, %v398
        %v412 = vpack.c.b16 %v401, %v400
        %v413 = vpack.c.b16 %v403, %v402
        %v414 = vpack.c.b16 %v405, %v404
        %v415 = vpack.c.b16 %v407, %v406
        %v422 = vunpack.c.l.b16 %v210
        %v423 = vunpack.c.l.b16 %v211
        %v424 = vunpack.c.l.b16 %v212
        %v425 = vunpack.c.l.b16 %v213
        %v426 = vunpack.c.l.b16 %v214
        %v427 = vunpack.c.l.b16 %v215
        %v428 = vpack.c.b16 %v423, %v422
        %v429 = vpack.c.b16 %v425, %v424
        %v430 = vpack.c.b16 %v427, %v426
        %v435 = vsel %vm302, %v408, 0
        %v438 = vsel %vm302, %v409, 0
        %v441 = vsel %vm302, %v410, 0
        %v444 = vsel %vm302, %v411, 0
        %v447 = vsel %vm302, %v412, 0
        %v450 = vsel %vm302, %v413, 0
        %v453 = vsel %vm302, %v414, 0
        %v456 = vsel %vm302, %v415, 0
        %458 = vmatpush.bf16.msra.mxu0 0
        %459 = vmatpush.bf16.msra.mxu0 0
        %460 = vmatpush.bf16.msra.mxu0 0
        %461 = vmatpush.bf16.msra.mxu0 0
        %462 = vmatpush.bf16.msra.mxu0 0
        %463 = vmatpush.bf16.msra.mxu0 %v430
        %464 = vmatpush.bf16.msra.mxu0 %v429
        %465 = vmatpush.bf16.msra.mxu0 %v428
        %466 = vmatmul.bf16.gmra.mxu0 %v435
        %v467 = vpop.f32.mrf.mxu0
        %v468 = vadd.f32 %v337, %v467
        %v469 = vpop.f32.mrf.mxu0
        %v470 = vadd.f32 %v339, %v469
        %471 = vmatmul.bf16.gmra.mxu0 %v438
        %v472 = vpop.f32.mrf.mxu0
        %v473 = vadd.f32 %v342, %v472
        %v474 = vpop.f32.mrf.mxu0
        %v475 = vadd.f32 %v344, %v474
        %476 = vmatmul.bf16.gmra.mxu0 %v441
        %v477 = vpop.f32.mrf.mxu0
        %v478 = vadd.f32 %v347, %v477
        %v479 = vpop.f32.mrf.mxu0
        %v480 = vadd.f32 %v349, %v479
        %481 = vmatmul.bf16.gmra.mxu0 %v444
        %v482 = vpop.f32.mrf.mxu0
        %v483 = vadd.f32 %v352, %v482
        %v484 = vpop.f32.mrf.mxu0
        %v485 = vadd.f32 %v354, %v484
        %486 = vmatmul.bf16.gmra.mxu0 %v447
        %v487 = vpop.f32.mrf.mxu0
        %v488 = vadd.f32 %v357, %v487
        %v489 = vpop.f32.mrf.mxu0
        %v490 = vadd.f32 %v359, %v489
        %491 = vmatmul.bf16.gmra.mxu0 %v450
        %v492 = vpop.f32.mrf.mxu0
        %v493 = vadd.f32 %v362, %v492
        %v494 = vpop.f32.mrf.mxu0
        %v495 = vadd.f32 %v364, %v494
        %496 = vmatmul.bf16.gmra.mxu0 %v453
        %v497 = vpop.f32.mrf.mxu0
        %v498 = vadd.f32 %v367, %v497
        %v499 = vpop.f32.mrf.mxu0
        %v500 = vadd.f32 %v369, %v499
        %501 = vmatmul.bf16.gmra.mxu0 %v456
        %v502 = vpop.f32.mrf.mxu0
        %v503 = vadd.f32 %v372, %v502
        %v504 = vpop.f32.mrf.mxu0
        %v505 = vadd.f32 %v374, %v504
        %506 = vdwg.mxu0
        %s507 = sadd.s32 %s189, 32
        %s508 = sshra.s32 %s507, 3
        %s509 = sand.u32 %s507, 7
        %s510 = smul.addr %s508, 4
        %s511 = scalar_lea.vmem %s184, %s510
        %v512 = vld [vmem:[%s511] sm:$0xf]
        %v513 = vld [vmem:[%s511 + $0x4] sm:$0xf]
        %v514 = vld [vmem:[%s511 + $0x8] sm:$0xf]
        %v515 = vld [vmem:[%s511 + $0xc] sm:$0xf]
        %v516 = vld [vmem:[%s511 + $0x10] sm:$0xf]
        %v517 = vld [vmem:[%s511 + $0x14] sm:$0xf]
        %v518 = vld [vmem:[%s511 + $0x18] sm:$0xf]
        %v519 = vld [vmem:[%s511 + $0x1c] sm:$0xf]
        %v520 = vld [vmem:[%s511 + $0x20] sm:$0xf]
        %v521 = vld [vmem:[%s511 + $0x24] sm:$0xf]
        %v522 = vld [vmem:[%s511 + $0x28] sm:$0xf]
        %v523 = vld [vmem:[%s511 + $0x2c] sm:$0xf]
        %v524 = vld [vmem:[%s511 + $0x30] sm:$0xf]
        %v525 = vld [vmem:[%s511 + $0x34] sm:$0xf]
        %v526 = vld [vmem:[%s511 + $0x38] sm:$0xf]
        %v527 = vld [vmem:[%s511 + $0x3c] sm:$0xf]
        %s528 = scalar_lea.vmem %s1, 48
        %v529 = vld [vmem:[%s528] sm:$0xf]
        %v530 = vld [vmem:[%s528 + $0x4] sm:$0xf]
        %v531 = vld [vmem:[%s528 + $0x8] sm:$0xf]
        %v532 = vld [vmem:[%s528 + $0xc] sm:$0xf]
        %v533 = vld [vmem:[%s528 + $0x10] sm:$0xf]
        %v534 = vld [vmem:[%s528 + $0x14] sm:$0xf]
        %v551 = vunpack.c.l.b16 %v512
        %v552 = vunpack.c.l.b16 %v513
        %v553 = vunpack.c.l.b16 %v514
        %v554 = vunpack.c.l.b16 %v515
        %v555 = vunpack.c.l.b16 %v516
        %v556 = vunpack.c.l.b16 %v517
        %v557 = vunpack.c.l.b16 %v518
        %v558 = vunpack.c.l.b16 %v519
        %v559 = vunpack.c.l.b16 %v520
        %v560 = vunpack.c.l.b16 %v521
        %v561 = vunpack.c.l.b16 %v522
        %v562 = vunpack.c.l.b16 %v523
        %v563 = vunpack.c.l.b16 %v524
        %v564 = vunpack.c.l.b16 %v525
        %v565 = vunpack.c.l.b16 %v526
        %v566 = vunpack.c.l.b16 %v527
        %v567 = vpack.c.b16 %v552, %v551
        %v568 = vpack.c.b16 %v554, %v553
        %v569 = vpack.c.b16 %v556, %v555
        %v570 = vpack.c.b16 %v558, %v557
        %v571 = vpack.c.b16 %v560, %v559
        %v572 = vpack.c.b16 %v562, %v561
        %v573 = vpack.c.b16 %v564, %v563
        %v574 = vpack.c.b16 %v566, %v565
        %v581 = vunpack.c.l.b16 %v529
        %v582 = vunpack.c.l.b16 %v530
        %v583 = vunpack.c.l.b16 %v531
        %v584 = vunpack.c.l.b16 %v532
        %v585 = vunpack.c.l.b16 %v533
        %v586 = vunpack.c.l.b16 %v534
        %v587 = vpack.c.b16 %v582, %v581
        %v588 = vpack.c.b16 %v584, %v583
        %v589 = vpack.c.b16 %v586, %v585
        %v594 = vsel %vm302, %v567, 0
        %v597 = vsel %vm302, %v568, 0
        %v600 = vsel %vm302, %v569, 0
        %v603 = vsel %vm302, %v570, 0
        %v606 = vsel %vm302, %v571, 0
        %v609 = vsel %vm302, %v572, 0
        %v612 = vsel %vm302, %v573, 0
        %v615 = vsel %vm302, %v574, 0
        %617 = vmatpush.bf16.msra.mxu0 0
        %618 = vmatpush.bf16.msra.mxu0 0
        %619 = vmatpush.bf16.msra.mxu0 0
        %620 = vmatpush.bf16.msra.mxu0 0
        %621 = vmatpush.bf16.msra.mxu0 0
        %622 = vmatpush.bf16.msra.mxu0 %v589
        %623 = vmatpush.bf16.msra.mxu0 %v588
        %624 = vmatpush.bf16.msra.mxu0 %v587
        %625 = vmatmul.bf16.gmra.mxu0 %v594
        %v626 = vpop.f32.mrf.mxu0
        %v627 = vadd.f32 0.0, %v626
        %v628 = vpop.f32.mrf.mxu0
        %v629 = vadd.f32 0.0, %v628
        %630 = vmatmul.bf16.gmra.mxu0 %v597
        %v631 = vpop.f32.mrf.mxu0
        %v632 = vadd.f32 0.0, %v631
        %v633 = vpop.f32.mrf.mxu0
        %v634 = vadd.f32 0.0, %v633
        %635 = vmatmul.bf16.gmra.mxu0 %v600
        %v636 = vpop.f32.mrf.mxu0
        %v637 = vadd.f32 0.0, %v636
        %v638 = vpop.f32.mrf.mxu0
        %v639 = vadd.f32 0.0, %v638
        %640 = vmatmul.bf16.gmra.mxu0 %v603
        %v641 = vpop.f32.mrf.mxu0
        %v642 = vadd.f32 0.0, %v641
        %v643 = vpop.f32.mrf.mxu0
        %v644 = vadd.f32 0.0, %v643
        %645 = vmatmul.bf16.gmra.mxu0 %v606
        %v646 = vpop.f32.mrf.mxu0
        %v647 = vadd.f32 0.0, %v646
        %v648 = vpop.f32.mrf.mxu0
        %v649 = vadd.f32 0.0, %v648
        %650 = vmatmul.bf16.gmra.mxu0 %v609
        %v651 = vpop.f32.mrf.mxu0
        %v652 = vadd.f32 0.0, %v651
        %v653 = vpop.f32.mrf.mxu0
        %v654 = vadd.f32 0.0, %v653
        %655 = vmatmul.bf16.gmra.mxu0 %v612
        %v656 = vpop.f32.mrf.mxu0
        %v657 = vadd.f32 0.0, %v656
        %v658 = vpop.f32.mrf.mxu0
        %v659 = vadd.f32 0.0, %v658
        %660 = vmatmul.bf16.gmra.mxu0 %v615
        %v661 = vpop.f32.mrf.mxu0
        %v662 = vadd.f32 0.0, %v661
        %v663 = vpop.f32.mrf.mxu0
        %v664 = vadd.f32 0.0, %v663
        %665 = vdwg.mxu0
        %v666 = vadd.f32 %v468, %v627
        %v667 = vadd.f32 %v470, %v629
        %v668 = vadd.f32 %v473, %v632
        %v669 = vadd.f32 %v475, %v634
        %v670 = vadd.f32 %v478, %v637
        %v671 = vadd.f32 %v480, %v639
        %v672 = vadd.f32 %v483, %v642
        %v673 = vadd.f32 %v485, %v644
        %v674 = vadd.f32 %v488, %v647
        %v675 = vadd.f32 %v490, %v649
        %v676 = vadd.f32 %v493, %v652
        %v677 = vadd.f32 %v495, %v654
        %v678 = vadd.f32 %v498, %v657
        %v679 = vadd.f32 %v500, %v659
        %v680 = vadd.f32 %v503, %v662
        %v681 = vadd.f32 %v505, %v664
        %v682 = vld [vmem:[%s2] sm:$0x1]
        %vm683 = vcmp.ge.f32.partialorder %v666, 0.0
        %vm684 = vcmp.ge.f32.partialorder %v667, 0.0
        %vm685 = vcmp.ge.f32.partialorder %v668, 0.0
        %vm686 = vcmp.ge.f32.partialorder %v669, 0.0
        %vm687 = vcmp.ge.f32.partialorder %v670, 0.0
        %vm688 = vcmp.ge.f32.partialorder %v671, 0.0
        %vm689 = vcmp.ge.f32.partialorder %v672, 0.0
        %vm690 = vcmp.ge.f32.partialorder %v673, 0.0
        %vm691 = vcmp.ge.f32.partialorder %v674, 0.0
        %vm692 = vcmp.ge.f32.partialorder %v675, 0.0
        %vm693 = vcmp.ge.f32.partialorder %v676, 0.0
        %vm694 = vcmp.ge.f32.partialorder %v677, 0.0
        %vm695 = vcmp.ge.f32.partialorder %v678, 0.0
        %vm696 = vcmp.ge.f32.partialorder %v679, 0.0
        %vm697 = vcmp.ge.f32.partialorder %v680, 0.0
        %vm698 = vcmp.ge.f32.partialorder %v681, 0.0
        %v700 = vperm.slane %v682, 0
        %v702 = vmul.f32 %v700, %v666
        %v703 = vmul.f32 %v700, %v667
        %v704 = vmul.f32 %v700, %v668
        %v705 = vmul.f32 %v700, %v669
        %v706 = vmul.f32 %v700, %v670
        %v707 = vmul.f32 %v700, %v671
        %v708 = vmul.f32 %v700, %v672
        %v709 = vmul.f32 %v700, %v673
        %v710 = vmul.f32 %v700, %v674
        %v711 = vmul.f32 %v700, %v675
        %v712 = vmul.f32 %v700, %v676
        %v713 = vmul.f32 %v700, %v677
        %v714 = vmul.f32 %v700, %v678
        %v715 = vmul.f32 %v700, %v679
        %v716 = vmul.f32 %v700, %v680
        %v717 = vmul.f32 %v700, %v681
        %v718 = vsel %vm683, %v666, %v702
        %v719 = vsel %vm684, %v667, %v703
        %v720 = vsel %vm685, %v668, %v704
        %v721 = vsel %vm686, %v669, %v705
        %v722 = vsel %vm687, %v670, %v706
        %v723 = vsel %vm688, %v671, %v707
        %v724 = vsel %vm689, %v672, %v708
        %v725 = vsel %vm690, %v673, %v709
        %v726 = vsel %vm691, %v674, %v710
        %v727 = vsel %vm692, %v675, %v711
        %v728 = vsel %vm693, %v676, %v712
        %v729 = vsel %vm694, %v677, %v713
        %v730 = vsel %vm695, %v678, %v714
        %v731 = vsel %vm696, %v679, %v715
        %v732 = vsel %vm697, %v680, %v716
        %v733 = vsel %vm698, %v681, %v717
        %vm734 = vcmask 261120
        %735 = vst.msk [vmem:[%s179] sm:$0xff] %vm734, %v718
        %736 = vst.msk [vmem:[%s179 + $0x8] sm:$0xff] %vm734, %v719
        %737 = vst.msk [vmem:[%s179 + $0x10] sm:$0xff] %vm734, %v720
        %738 = vst.msk [vmem:[%s179 + $0x18] sm:$0xff] %vm734, %v721
        %739 = vst.msk [vmem:[%s179 + $0x20] sm:$0xff] %vm734, %v722
        %740 = vst.msk [vmem:[%s179 + $0x28] sm:$0xff] %vm734, %v723
        %741 = vst.msk [vmem:[%s179 + $0x30] sm:$0xff] %vm734, %v724
        %742 = vst.msk [vmem:[%s179 + $0x38] sm:$0xff] %vm734, %v725
        %743 = vst.msk [vmem:[%s179 + $0x40] sm:$0xff] %vm734, %v726
        %744 = vst.msk [vmem:[%s179 + $0x48] sm:$0xff] %vm734, %v727
        %745 = vst.msk [vmem:[%s179 + $0x50] sm:$0xff] %vm734, %v728
        %746 = vst.msk [vmem:[%s179 + $0x58] sm:$0xff] %vm734, %v729
        %747 = vst.msk [vmem:[%s179 + $0x60] sm:$0xff] %vm734, %v730
        %748 = vst.msk [vmem:[%s179 + $0x68] sm:$0xff] %vm734, %v731
        %749 = vst.msk [vmem:[%s179 + $0x70] sm:$0xff] %vm734, %v732
        %750 = vst.msk [vmem:[%s179 + $0x78] sm:$0xff] %vm734, %v733
        %s751 = sand.u32 %s109, 1
        %s752 = scalar_lea.sflag [#allocation3], %s751
        %s753 = sand.u32 %s109, 1
        %s754 = smul.addr %s753, 128
        %s755 = scalar_lea.vmem [#allocation2], %s754
        // Predicated region
        $region33: #{cnbr_forward_pallas.1} parent=31 // pred_check
          %p756 = pneg %p119
        $region34: #{cnbr_forward_pallas.1} parent=31 // pred_check_branch
          %758 = sbr.rel (%p756) target = $region36
        $region35: #{cnbr_forward_pallas.1} parent=31 // pred_region
          %s759 = smul.u32 %s21, 2
          %s760 = sadd.s32 %s759, %s22
          %s761 = smul.u32 16, %s760
          %763 = vsyncadd %s752, 0
          %s764 = smul.addr %s761, 8
          %s765 = scalar_lea.hbm %s3, %s764
          %s766 = sshll.u32 %s755, 4
          %s767 = int_to_ptr.vmem [resolvable:$true] %s766
          %s768 = sshll.u32 %s765, 4
          %s769 = int_to_ptr.hbm [resolvable:$true] %s768
          %774 = dma.vmem_to_hbm [thread:$0]  %s767, 2048, %s769, %s752, 128, 128, 8
        $region36: #{cnbr_forward_pallas.1} parent=31 // pred_fallthru
          _
      $region32: #{cnbr_forward_pallas.1} parent=5 // pred_fallthru
        _
      %p775 = scmp.le.s32.totalorder 2, %s12
      // Predicated region
      $region37: #{cnbr_forward_pallas.1} parent=5 // pred_check
        %p776 = pneg %p775
      $region38: #{cnbr_forward_pallas.1} parent=5 // pred_check_branch
        %778 = sbr.rel (%p776) target = $region40
      $region39: #{cnbr_forward_pallas.1} parent=5 // pred_region
        %s779 = ssub.s32 %s12, 2
        // Predicated region
        $region41: #{cnbr_forward_pallas.1} parent=39 // pred_check
          %p780 = pneg %p125
        $region42: #{cnbr_forward_pallas.1} parent=39 // pred_check_branch
          %782 = sbr.rel (%p780) target = $region44
        $region43: #{cnbr_forward_pallas.1} parent=39 // pred_region
          %s783 = sand.u32 %s110, 1
          %s784 = scalar_lea.sflag [#allocation3], %s783
          %s785 = sand.u32 %s110, 1
          %s786 = smul.addr %s785, 128
          %s787 = scalar_lea.vmem [#allocation2], %s786
          %789 = dma.done %s784, 2048
        $region44: #{cnbr_forward_pallas.1} parent=39 // pred_fallthru
          _
      $region40: #{cnbr_forward_pallas.1} parent=5 // pred_fallthru
        _
    $region6: #{cnbr_forward_pallas.1} parent=1 // loop_footer
      %s16 = sadd.s32 1, %s12
    $region7: #{cnbr_forward_pallas.1} parent=1 // loop_footer_branch
      %11 = sbr.rel target = $region3
    $region8: #{cnbr_forward_pallas.1} parent=1 // loop_exit
      _
    %790 = vsyncpa [#allocation3], 1
    %s791 = scalar_lea.sflag [#allocation3], 1
    %792 = vsyncpa %s791, 1

</llo_original>
